<compile_context>
chip_gen: v7x
topology: tpu7x:2x2x1
jax: 0.10.0
libtpu: 0.0.40
codegen_flags: <defaults>
</compile_context>

<pallas_src>
import functools

import jax
import jax.numpy as jnp
from jax.experimental import pallas as pl
from jax.experimental.pallas import tpu as pltpu


def _round_up(x, m):
    return ((x + m - 1) // m) * m


def linear_kernel(x_ref, w_ref, b_ref, o_ref):
    # (TB, K) @ (K, N) on the MXU with f32 accumulate; f32 bias broadcast over the batch on the VPU.
    acc = jnp.dot(x_ref[...], w_ref[...], preferred_element_type=jnp.float32)
    o_ref[...] = (acc + b_ref[...]).astype(o_ref.dtype)
    # Raw logits to match the PyTorch forward (no activation fused).


def prepare_params(weight, bias, compute_dtype=jnp.float32):
    """One-time layout prep (outside the per-call path).

    weight: PyTorch layout (num_classes, input_dim) -> (input_dim, num_classes), compute_dtype
    bias:   (num_classes,)                          -> (1, num_classes), always f32
    compute_dtype=jnp.bfloat16 halves the dominant HBM read stream (x is cast to match in the
    wrapper); accumulation stays f32.
    """
    w_t = jnp.asarray(weight, jnp.float32).T.astype(compute_dtype)
    b2d = jnp.asarray(bias, jnp.float32).reshape(1, -1)
    return w_t, b2d


def _choose_tile(batch, block_b):
    """Static (trace-time) batch-tile selection.

    - B <= 512: single full-array tile (block == full dim is always legal, even with B % 8 != 0).
    - otherwise: at least 2 tiles (so v7x's 2 TensorCores both run), tiles a multiple of 512,
      capped at block_b to bound VMEM (double-buffered x tile stays well under every chip's
      scoped-VMEM default).
    """
    if batch <= 512:
        return batch
    return min(block_b, _round_up(pl.cdiv(batch, 2), 512))


@functools.partial(jax.jit, static_argnames=("block_b",))
def logistic_regression_forward(x, w_t, b2d, *, block_b=4096):
    """x: (B, K), w_t: (K, N) pre-transposed, b2d: (1, N) f32 -> (B, N) f32 logits."""
    B, K = x.shape
    N = w_t.shape[1]

    # Match the (possibly bf16) weight dtype at the kernel boundary; MXU accumulates f32 either way.
    x = x.astype(w_t.dtype)

    tb = _choose_tile(B, block_b)
    grid = (pl.cdiv(B, tb),)

    return pl.pallas_call(
        linear_kernel,
        out_shape=jax.ShapeDtypeStruct((B, N), jnp.float32),
        grid_spec=pl.GridSpec(
            grid=grid,
            in_specs=[
                pl.BlockSpec((tb, K), lambda i: (i, 0)),   # streamed, double-buffered batch tiles
                pl.BlockSpec((K, N), lambda i: (0, 0)),    # weight resident in VMEM across tiles
                pl.BlockSpec((1, N), lambda i: (0, 0)),    # bias resident in VMEM across tiles
            ],
            out_specs=pl.BlockSpec((tb, N), lambda i: (i, 0)),
        ),
        compiler_params=pltpu.CompilerParams(
            # Independent batch tiles: shard across v7x's 2 TensorCores; neutral on v5e/v6e.
            dimension_semantics=("parallel",),
        ),
    )(x, w_t, b2d)


@jax.jit
def _xla_linear(x, w_t, b2d):
    # Small-batch fallback: single-tile Pallas has no DMA/compute overlap and the fixed call
    # overhead dominates a <~400 KB problem; XLA's fused matmul is at parity or faster there.
    return jnp.dot(x.astype(w_t.dtype), w_t, preferred_element_type=jnp.float32) + b2d


def logistic_regression_apply(x, w_t, b2d, *, small_batch_cutoff=1024, block_b=4096):
    """Dispatcher: Pallas kernel for large batches, fused XLA matmul for tiny ones."""
    if x.shape[0] <= small_batch_cutoff:
        return _xla_linear(x, w_t, b2d)
    return logistic_regression_forward(x, w_t, b2d, block_b=block_b)


if __name__ == "__main__":
    input_dim = 100
    num_classes = 10

    key = jax.random.PRNGKey(0)
    kx, kw, kb, kx2, kx3 = jax.random.split(key, 5)

    # Deterministic parameter init mimicking nn.Linear's U(-1/sqrt(fan_in), 1/sqrt(fan_in)).
    bound = 1.0 / (input_dim ** 0.5)
    weight = jax.random.uniform(kw, (num_classes, input_dim), jnp.float32, -bound, bound)
    bias = jax.random.uniform(kb, (num_classes,), jnp.float32, -bound, bound)

    # One-time layout prep (f32 for exact parity; bf16 variant prepared separately below).
    w_t, b2d = prepare_params(weight, bias)

    # --- Small shape: exercises the single-tile Pallas path (grid=(1,)). ---
    batch = 8
    x = jax.random.normal(kx, (batch, input_dim), jnp.float32)
    out = jax.block_until_ready(logistic_regression_forward(x, w_t, b2d))
    ref = x @ weight.T + bias
    assert out.shape == (batch, num_classes)
    assert jnp.allclose(out, ref, atol=1e-5, rtol=1e-5), "mismatch vs reference (small batch)"

    # Dispatcher routes this tiny batch to the XLA fallback; same numbers expected.
    out_disp = jax.block_until_ready(logistic_regression_apply(x, w_t, b2d))
    assert jnp.allclose(out_disp, ref, atol=1e-5, rtol=1e-5), "mismatch vs reference (dispatcher)"

    # --- Medium batch: >= 2 tiles so both v7x TensorCores get work (tb=2048, grid=2). ---
    med_batch = 4096
    x_med = jax.random.normal(kx2, (med_batch, input_dim), jnp.float32)
    out_med = jax.block_until_ready(logistic_regression_forward(x_med, w_t, b2d))
    ref_med = x_med @ weight.T + bias
    assert out_med.shape == (med_batch, num_classes)
    assert jnp.allclose(out_med, ref_med, atol=1e-5, rtol=1e-5), "mismatch vs reference (medium)"

    # --- Large batch with a partial last tile: tb=4096, grid=4 (3 full + 1 partial 512-row tile). ---
    big_batch = 12800
    x_big = jax.random.normal(kx3, (big_batch, input_dim), jnp.float32)
    out_big = jax.block_until_ready(logistic_regression_forward(x_big, w_t, b2d))
    ref_big = x_big @ weight.T + bias
    assert out_big.shape == (big_batch, num_classes)
    assert jnp.allclose(out_big, ref_big, atol=1e-5, rtol=1e-5), "mismatch vs reference (big batch)"

    # --- Optional bf16 compute path (halves the dominant HBM read stream; f32 accumulate). ---
    w_t_bf16, b2d_bf16 = prepare_params(weight, bias, compute_dtype=jnp.bfloat16)
    out_bf16 = jax.block_until_ready(logistic_regression_forward(x_med, w_t_bf16, b2d_bf16))
    assert out_bf16.dtype == jnp.float32
    assert jnp.allclose(out_bf16, ref_med, atol=5e-2, rtol=5e-2), "mismatch vs reference (bf16)"

    print("KERNEL_OK")
</pallas_src>

<mosaic_0001>
module attributes {stable_mosaic.version = 11 : i64} {
  func.func @linear_kernel(%arg0: i32, %arg1: memref<8x100xf32, #tpu.memory_space<vmem>>, %arg2: memref<100x10xf32, #tpu.memory_space<vmem>>, %arg3: memref<1x10xf32, #tpu.memory_space<vmem>>, %arg4: memref<8x10xf32, #tpu.memory_space<vmem>>) attributes {dimension_semantics = [#tpu.dimension_semantics<parallel>], iteration_bounds = array<i64: 1>, scalar_prefetch = 0 : i64, scratch_operands = 0 : i64, tpu.core_type = #tpu.core_type<tc>, window_params = [{transform_indices = @transform_0, window_bounds = array<i64: 8, 100>}, {pipeline_mode = #tpu.pipeline_mode<synchronous>, transform_indices = @transform_1, window_bounds = array<i64: 100, 10>}, {pipeline_mode = #tpu.pipeline_mode<synchronous>, transform_indices = @transform_2, window_bounds = array<i64: 1, 10>}, {transform_indices = @transform_3, window_bounds = array<i64: 8, 10>}]} {
    %c0 = arith.constant 0 : index
    %c0_0 = arith.constant 0 : index
    %0 = vector.load %arg1[%c0, %c0_0] : memref<8x100xf32, #tpu.memory_space<vmem>>, vector<8x100xf32>
    %c0_1 = arith.constant 0 : index
    %c0_2 = arith.constant 0 : index
    %1 = vector.load %arg2[%c0_1, %c0_2] : memref<100x10xf32, #tpu.memory_space<vmem>>, vector<100x10xf32>
    %cst = arith.constant dense<0.000000e+00> : vector<8x10xf32>
    %2 = tpu.matmul %0, %1, %cst {dimension_numbers = #tpu.dot_dimension_numbers<[1], [0], [0], [1], [0, 0, 1, 1], [], []>} : vector<8x100xf32>, vector<100x10xf32>, vector<8x10xf32> -> vector<8x10xf32>
    %c0_3 = arith.constant 0 : index
    %c0_4 = arith.constant 0 : index
    %3 = vector.load %arg3[%c0_3, %c0_4] : memref<1x10xf32, #tpu.memory_space<vmem>>, vector<1x10xf32>
    %4 = vector.broadcast %3 : vector<1x10xf32> to vector<8x10xf32>
    %5 = arith.addf %2, %4 : vector<8x10xf32>
    %c0_5 = arith.constant 0 : index
    %c0_6 = arith.constant 0 : index
    %6 = vector.load %arg4[%c0_5, %c0_6] : memref<8x10xf32, #tpu.memory_space<vmem>>, vector<8x10xf32>
    tpu.vector_store %arg4[%c0_5, %c0_6], %5 {strides = array<i32>} : memref<8x10xf32, #tpu.memory_space<vmem>>, vector<8x10xf32>,
    return
  }
  func.func @transform_0(%arg0: i32) -> (i32, i32) {
    %c0_i32 = arith.constant 0 : i32
    %c0_i32_0 = arith.constant 0 : i32
    return %arg0, %c0_i32 : i32, i32
  }
  func.func @transform_1(%arg0: i32) -> (i32, i32) {
    %c0_i32 = arith.constant 0 : i32
    %c0_i32_0 = arith.constant 0 : i32
    %c0_i32_1 = arith.constant 0 : i32
    return %c0_i32, %c0_i32_0 : i32, i32
  }
  func.func @transform_2(%arg0: i32) -> (i32, i32) {
    %c0_i32 = arith.constant 0 : i32
    %c0_i32_0 = arith.constant 0 : i32
    %c0_i32_1 = arith.constant 0 : i32
    return %c0_i32, %c0_i32_0 : i32, i32
  }
  func.func @transform_3(%arg0: i32) -> (i32, i32) {
    %c0_i32 = arith.constant 0 : i32
    %c0_i32_0 = arith.constant 0 : i32
    return %arg0, %c0_i32 : i32, i32
  }
}

</mosaic_0001>

<llo_original>
// kernel: logistic_regression_forward.1
$region0: #{logistic_regression_forward.1}
  #allocation0 [shape = 'u32[]', space=smem, size = 0x4, offset = 0x4, fixed_abs, tag = 'smem constant byte address 0x4 - core index']
  #allocation1 [shape = 'u32[144,128]{1,0:T(1,128)}', space=vmem, size = 0x12000, scoped, tag = 'internal scratch']
  %s0 = inlined_call_operand.vmem [shape: f32[8,100], index: 0, kind: input, shape index: {}]
  %s1 = inlined_call_operand.vmem [shape: f32[100,10], index: 1, kind: input, shape index: {}]
  %s2 = inlined_call_operand.vmem [shape: f32[1,10], index: 2, kind: input, shape index: {}]
  %s3 = inlined_call_operand.hbm [shape: f32[8,10], index: 3, kind: output, shape index: {}]
  %s4 = sld [smem:[#allocation0]]
  $region22: #{logistic_regression_forward.1} parent=0
    _
  %s6 = ssub.s32 1, %s4
  %s7 = scalar_select 0, %s6, %s4
  $region1: #{logistic_regression_forward.1} parent=0
    #allocation2 [shape = 'u8[4096]{0}', space=vmem, size = 0x1000, scoped, tag = 'output window, operand 0, single buffered']
    #allocation3 [shape = 's32[1]{0}', space=sflag, size = 0x4, scoped, tag = 'scoped memory for logistic_regression_forward.1']
    %8 = vsyncpa [#allocation3], 0
    // Predicated region
    $region2: #{logistic_regression_forward.1} parent=1 // pred_check
      _
    $region3: #{logistic_regression_forward.1} parent=1 // pred_check_branch
      %10 = sbr.rel (0) target = $region5
    $region4: #{logistic_regression_forward.1} parent=1 // pred_region
      _
    $region5: #{logistic_regression_forward.1} parent=1 // pred_fallthru
      _
    // Predicated region
    $region6: #{logistic_regression_forward.1} parent=1 // pred_check
      _
    $region7: #{logistic_regression_forward.1} parent=1 // pred_check_branch
      %12 = sbr.rel (0) target = $region9
    $region8: #{logistic_regression_forward.1} parent=1 // pred_region
      _
    $region9: #{logistic_regression_forward.1} parent=1 // pred_fallthru
      _
    // Predicated region
    $region10: #{logistic_regression_forward.1} parent=1 // pred_check
      _
    $region11: #{logistic_regression_forward.1} parent=1 // pred_check_branch
      %14 = sbr.rel (0) target = $region13
    $region12: #{logistic_regression_forward.1} parent=1 // pred_region
      _
    $region13: #{logistic_regression_forward.1} parent=1 // pred_fallthru
      _
    %v15 = vld [vmem:[%s0] sm:$0xff]
    %v16 = vld [vmem:[%s1] sm:$0xff]
    %v17 = vld [vmem:[%s1 + $0x8] sm:$0xff]
    %v18 = vld [vmem:[%s1 + $0x10] sm:$0xff]
    %v19 = vld [vmem:[%s1 + $0x18] sm:$0xff]
    %v20 = vld [vmem:[%s1 + $0x20] sm:$0xff]
    %v21 = vld [vmem:[%s1 + $0x28] sm:$0xff]
    %v22 = vld [vmem:[%s1 + $0x30] sm:$0xff]
    %v23 = vld [vmem:[%s1 + $0x38] sm:$0xff]
    %v24 = vld [vmem:[%s1 + $0x40] sm:$0xff]
    %v25 = vld [vmem:[%s1 + $0x48] sm:$0xff]
    %v26 = vld [vmem:[%s1 + $0x50] sm:$0xff]
    %v27 = vld [vmem:[%s1 + $0x58] sm:$0xff]
    %v28 = vld [vmem:[%s1 + $0x60] sm:$0xf]
    %v29 = vld [vmem:[%s2] sm:$0x1]
    %v31 = vlaneseq
    %v32 = vshrl.u32 %v31, 7
    %v33 = vsub.s32 0, %v32
    %v34 = vrot.slane %v29, %v33
    %vm36 = vcmask 818176
    %v38 = vsel %vm36, %v15, 0
    %vm40 = vcmask 1043456
    %v42 = vsel %vm40, %v28, 0
    %44 = vmatprep.subr.mxu0 0.0
    %45 = vmatpush1.msra.mxu0 %v16
    %46 = vmatprep.subr.mxu0 0.0
    %47 = vmatpush1.msra.mxu0 %v17
    %48 = vmatprep.subr.mxu0 0.0
    %49 = vmatpush1.msra.mxu0 %v18
    %50 = vmatprep.subr.mxu0 0.0
    %51 = vmatpush1.msra.mxu0 %v19
    %52 = vmatprep.subr.mxu0 0.0
    %53 = vmatpush1.msra.mxu0 %v20
    %54 = vmatprep.subr.mxu0 0.0
    %55 = vmatpush1.msra.mxu0 %v21
    %56 = vmatprep.subr.mxu0 0.0
    %57 = vmatpush1.msra.mxu0 %v22
    %58 = vmatprep.subr.mxu0 0.0
    %59 = vmatpush1.msra.mxu0 %v23
    %60 = vmatprep.subr.mxu0 0.0
    %61 = vmatpush1.msra.mxu0 %v24
    %62 = vmatprep.subr.mxu0 0.0
    %63 = vmatpush1.msra.mxu0 %v25
    %64 = vmatprep.subr.mxu0 0.0
    %65 = vmatpush1.msra.mxu0 %v26
    %66 = vmatprep.subr.mxu0 0.0
    %67 = vmatpush1.msra.mxu0 %v27
    %68 = vmatprep.subr.mxu0 0.0
    %69 = vmatpush1.msra.mxu0 %v42
    %70 = vmatprep.subr.mxu0 0.0
    %71 = vmatpush1.msra.mxu0 0.0
    %72 = vmatprep.subr.mxu0 0.0
    %73 = vmatpush1.msra.mxu0 0.0
    %74 = vmatprep.subr.mxu0 0.0
    %75 = vmatpush1.msra.mxu0 0.0
    %76 = vmatprep.subr.mxu0 0.0
    %77 = vmatpush1.msra.mxu0 0.0
    %78 = vmatprep.subr.mxu0 0.0
    %79 = vmatpush1.msra.mxu0 0.0
    %80 = vmatprep.subr.mxu0 0.0
    %81 = vmatpush1.msra.mxu0 0.0
    %82 = vmatprep.subr.mxu0 0.0
    %83 = vmatpush1.msra.mxu0 0.0
    %84 = vmatprep.subr.mxu0 0.0
    %85 = vmatpush1.msra.mxu0 0.0
    %86 = vmatprep.subr.mxu0 0.0
    %87 = vmatpush1.msra.mxu0 0.0
    %88 = vmatprep.subr.mxu0 0.0
    %89 = vmatpush1.msra.mxu0 0.0
    %90 = vmatprep.subr.mxu0 0.0
    %91 = vmatpush1.msra.mxu0 0.0
    %92 = vmatprep.subr.mxu0 0.0
    %93 = vmatpush1.msra.mxu0 0.0
    %94 = vmatprep.subr.mxu0 0.0
    %95 = vmatpush1.msra.mxu0 0.0
    %96 = vmatprep.subr.mxu0 0.0
    %97 = vmatpush1.msra.mxu0 0.0
    %98 = vmatprep.subr.mxu0 0.0
    %99 = vmatpush1.msra.mxu0 0.0
    %100 = vmatprep.subr.mxu0 0.0
    %101 = vmatpush1.msra.mxu0 0.0
    %102 = vmatprep.subr.mxu0 0.0
    %103 = vmatpush1.msra.mxu0 0.0
    %104 = vmatprep.subr.mxu0 0.0
    %105 = vmatpush1.msra.mxu0 0.0
    %106 = vmatprep.subr.mxu0 0.0
    %107 = vmatpush1.msra.mxu0 0.0
    %108 = vmatprep.mubr.f32.mxu0 0.0
    %109 = vmatmul.mubr.f32.gmra.mrb[0].mxu0 %v38
    %v110 = vpop.f32.mrb[0].mxu0
    %v111 = vadd.f32 %v34, %v110
    %v112 = vpop.f32.mrb[0].mxu0
    %113 = vdwg.mxu0
    %vm114 = vcmask 80896
    %115 = vst.msk [vmem:[#allocation2] sm:$0xff] %vm114, %v111
    // Predicated region
    $region14: #{logistic_regression_forward.1} parent=1 // pred_check
      _
    $region15: #{logistic_regression_forward.1} parent=1 // pred_check_branch
      %117 = sbr.rel (0) target = $region17
    $region16: #{logistic_regression_forward.1} parent=1 // pred_region
      %s119 = ssub.s32 128, 128
      %120 = vsyncadd [#allocation3], %s119
      %s122 = sshll.u32 [#allocation2], 4
      %s123 = int_to_ptr.vmem [resolvable:$true] %s122
      %125 = dma.vmem_to_hbm [thread:$0]  %s123, 128, %s3, [#allocation3]
    $region17: #{logistic_regression_forward.1} parent=1 // pred_fallthru
      _
    // Predicated region
    $region18: #{logistic_regression_forward.1} parent=1 // pred_check
      _
    $region19: #{logistic_regression_forward.1} parent=1 // pred_check_branch
      %127 = sbr.rel (0) target = $region21
    $region20: #{logistic_regression_forward.1} parent=1 // pred_region
      %128 = dma.done [#allocation3], 128
    $region21: #{logistic_regression_forward.1} parent=1 // pred_fallthru
      _
    %129 = vsyncpa [#allocation3], 1

</llo_original>
